<compile_context>
chip_gen: v7x
topology: tpu7x:2x2x1
jax: 0.10.0
libtpu: 0.0.40
codegen_flags: <defaults>
</compile_context>

<pallas_src>
import jax
import jax.numpy as jnp
from jax.experimental import pallas as pl
from jax.experimental.pallas import tpu as pltpu


def _round_up(x, m):
    return ((x + m - 1) // m) * m


# ---------------------------------------------------------------------------
# Pass 1: transposed im2col GEMM -> per-tile partial BN statistics only.
# ---------------------------------------------------------------------------
def conv_stats_kernel(w_ref, p_ref, sum_ref, sq_ref):
    # w_ref:   (C8, K)    bf16  flattened filter (channels on sublanes)
    # p_ref:   (K,  TM)   bf16  transposed im2col patch tile (rows on lanes)
    # sum_ref: (1, C8, 1) f32   per-tile per-channel sum
    # sq_ref:  (1, C8, 1) f32   per-tile per-channel sum of squares
    g = jnp.dot(w_ref[...], p_ref[...],
                preferred_element_type=jnp.float32)          # (C8, TM)
    # Zero-padded rows (columns >= M) of the patch slab produce exactly-zero
    # GEMM columns (no bias is added here), so they contribute nothing to the
    # sums and no row mask is needed.
    sum_ref[...] = jnp.sum(g, axis=1, keepdims=True)[None]
    sq_ref[...] = jnp.sum(g * g, axis=1, keepdims=True)[None]


# ---------------------------------------------------------------------------
# Pass 2: recompute the GEMM, apply fused BN scale/shift + ReLU, write output.
# ---------------------------------------------------------------------------
def bn_relu_kernel(w_ref, p_ref, scale_ref, shift_ref, out_ref):
    # scale/shift: (C8, 1) f32 (precomputed in JAX); out_ref: (C8, TM) f32
    g = jnp.dot(w_ref[...], p_ref[...],
                preferred_element_type=jnp.float32)          # (C8, TM)
    out_ref[...] = jnp.maximum(g * scale_ref[...] + shift_ref[...], 0.0)


# ---------------------------------------------------------------------------
# Wrapper: NCHW API, transposed im2col, two lightweight pallas_calls.
# ---------------------------------------------------------------------------
def conv_block_forward(x_nchw, weight, bias, gamma, beta, *,
                       padding=1, eps=1e-5, row_tile=2048):
    """x_nchw: (N, Cin, H, W); weight: (Cout, Cin, KH, KW) (PyTorch layout)."""
    # TODO(synk): stride > 1, dilation != 1, and grouped conv are not handled.
    N, Cin, H, W = x_nchw.shape
    Cout, wcin, KH, KW = weight.shape
    assert wcin == Cin, (wcin, Cin)
    Ho = H + 2 * padding - KH + 1
    Wo = W + 2 * padding - KW + 1

    M = N * Ho * Wo                 # rows (lane dim)
    K = KH * KW * Cin               # contraction dim (unpadded in HBM)
    C8 = _round_up(Cout, 8)         # channels on sublanes: pad to 8 only

    # bias cancels exactly under train-mode BatchNorm (mean is subtracted),
    # so it never enters the kernels; keeping it out of the sum/sum^2
    # accumulation also reduces E[x^2]-E[x]^2 cancellation.
    del bias

    # ---- tile / grid selection (lane dim carries rows) ----
    target = max(128, _round_up(M, 128) // 4)     # aim for G >= 4 when possible
    TM = _round_up(min(row_tile, target), 128)
    G = pl.cdiv(M, TM)
    if G > 1 and G % 2:
        G += 1                                    # even split across v7x's 2 TCs
    Mp = G * TM

    # ---- layout plumbing (plain JAX): NCHW -> padded NHWC -> (K, Mp) slab ----
    x_nhwc = jnp.transpose(x_nchw, (0, 2, 3, 1)).astype(jnp.float32)
    x_pad = jnp.pad(x_nhwc, ((0, 0), (padding, padding),
                             (padding, padding), (0, 0)))
    taps = [x_pad[:, kh:kh + Ho, kw:kw + Wo, :]
            for kh in range(KH) for kw in range(KW)]
    patches = jnp.stack(taps, axis=0)                    # (T, N, Ho, Wo, Cin)
    patches = jnp.transpose(patches, (0, 4, 1, 2, 3))    # (T, Cin, N, Ho, Wo)
    patches = patches.reshape(K, M)
    patches = jnp.pad(patches, ((0, 0), (0, Mp - M))).astype(jnp.bfloat16)

    w_flat = jnp.transpose(weight, (0, 2, 3, 1)).reshape(Cout, K)
    w_flat = jnp.pad(w_flat.astype(jnp.float32),
                     ((0, C8 - Cout), (0, 0))).astype(jnp.bfloat16)   # (C8, K)

    # VMEM budget sized from the actual block footprint (double-buffered),
    # floored for compiler headroom and capped at 32 MiB so it is safe on
    # every generation (incl. v7x's 64 MiB physical / 32 MiB scoped VMEM).
    patch_blk = TM * _round_up(K, 16) * 2
    w_blk = _round_up(C8, 16) * _round_up(K, 128) * 2
    out_blk = C8 * TM * 4
    vmem_limit = int(min(max(2 * patch_blk + 2 * w_blk + 2 * out_blk
                             + (2 << 20), 16 << 20), 32 << 20))

    # ---- pass 1: GEMM + per-tile partial stats (no conv intermediate) ----
    sums, sqs = pl.pallas_call(
        conv_stats_kernel,
        grid=(G,),
        in_specs=[
            pl.BlockSpec((C8, K), lambda i: (0, 0)),
            pl.BlockSpec((K, TM), lambda i: (0, i)),
        ],
        out_specs=[
            pl.BlockSpec((1, C8, 1), lambda i: (i, 0, 0)),
            pl.BlockSpec((1, C8, 1), lambda i: (i, 0, 0)),
        ],
        out_shape=(
            jax.ShapeDtypeStruct((G, C8, 1), jnp.float32),
            jax.ShapeDtypeStruct((G, C8, 1), jnp.float32),
        ),
        compiler_params=pltpu.CompilerParams(
            dimension_semantics=("parallel",),
            vmem_limit_bytes=vmem_limit,
        ),
        cost_estimate=pl.CostEstimate(
            flops=2 * Mp * K * C8,
            transcendentals=0,
            bytes_accessed=int(patches.size) * 2 + int(w_flat.size) * 2
                           + 2 * G * C8 * 4,
        ),
    )(w_flat, patches)

    # ---- BN finalize (tiny, plain JAX): exact full-batch train-mode stats ----
    inv_n = 1.0 / float(M)
    mean = jnp.sum(sums, axis=0) * inv_n                      # (C8, 1)
    var = jnp.maximum(jnp.sum(sqs, axis=0) * inv_n - mean * mean, 0.0)
    # TODO(synk): for pathological data with |E[conv]| >> std per channel, a
    # per-channel pivot (e.g. first-tile mean) would further guard the
    # E[x^2]-E[x]^2 form against cancellation.
    g_p = jnp.pad(gamma.astype(jnp.float32), (0, C8 - Cout)).reshape(C8, 1)
    b_p = jnp.pad(beta.astype(jnp.float32), (0, C8 - Cout)).reshape(C8, 1)
    scale = g_p * jax.lax.rsqrt(var + eps)                    # (C8, 1)
    shift = b_p - mean * scale                                # (C8, 1)

    # ---- pass 2: recompute GEMM, fused scale/shift + ReLU, final output ----
    y_t = pl.pallas_call(
        bn_relu_kernel,
        grid=(G,),
        in_specs=[
            pl.BlockSpec((C8, K), lambda i: (0, 0)),
            pl.BlockSpec((K, TM), lambda i: (0, i)),
            pl.BlockSpec((C8, 1), lambda i: (0, 0)),
            pl.BlockSpec((C8, 1), lambda i: (0, 0)),
        ],
        out_specs=pl.BlockSpec((C8, TM), lambda i: (0, i)),
        out_shape=jax.ShapeDtypeStruct((C8, Mp), jnp.float32),
        compiler_params=pltpu.CompilerParams(
            dimension_semantics=("parallel",),
            vmem_limit_bytes=vmem_limit,
        ),
        cost_estimate=pl.CostEstimate(
            flops=2 * Mp * K * C8 + 3 * Mp * C8,
            transcendentals=0,
            bytes_accessed=int(patches.size) * 2 + int(w_flat.size) * 2
                           + Mp * C8 * 4 + 2 * C8 * 4,
        ),
    )(w_flat, patches, scale, shift)

    # ---- layout plumbing back: slice off padding, (Cout, M) -> NCHW ----
    y = y_t[:Cout, :M].reshape(Cout, N, Ho, Wo)
    return jnp.transpose(y, (1, 0, 2, 3))


def reference_forward(x_nchw, weight, bias, gamma, beta, *, padding=1):
    """Pure-JAX f32 reference (conv -> train-mode BN -> ReLU), NCHW."""
    y = jax.lax.conv_general_dilated(
        x_nchw.astype(jnp.float32), weight.astype(jnp.float32),
        window_strides=(1, 1),
        padding=((padding, padding), (padding, padding)),
        dimension_numbers=("NCHW", "OIHW", "NCHW"),
        preferred_element_type=jnp.float32)
    y = y + bias.reshape(1, -1, 1, 1)
    mean = jnp.mean(y, axis=(0, 2, 3), keepdims=True)
    var = jnp.mean((y - mean) ** 2, axis=(0, 2, 3), keepdims=True)
    yhat = (y - mean) * jax.lax.rsqrt(var + 1e-5)
    y = yhat * gamma.reshape(1, -1, 1, 1) + beta.reshape(1, -1, 1, 1)
    return jnp.maximum(y, 0.0)


if __name__ == "__main__":
    # Conv_block(in_channels=4, out_channels=8, kernel_size=3, padding=1)
    N, Cin, H, W = 2, 4, 16, 16
    Cout, KH, KW = 8, 3, 3

    key = jax.random.PRNGKey(0)
    kx, kw, kb = jax.random.split(key, 3)
    x = jax.random.normal(kx, (N, Cin, H, W), dtype=jnp.float32)
    weight = jax.random.normal(kw, (Cout, Cin, KH, KW), dtype=jnp.float32) * 0.1
    bias = jax.random.normal(kb, (Cout,), dtype=jnp.float32) * 0.01
    gamma = jnp.ones((Cout,), dtype=jnp.float32)   # BatchNorm2d.weight default
    beta = jnp.zeros((Cout,), dtype=jnp.float32)   # BatchNorm2d.bias default

    out = conv_block_forward(x, weight, bias, gamma, beta, padding=1)
    out = jax.block_until_ready(out)

    ref = jax.block_until_ready(
        reference_forward(x, weight, bias, gamma, beta, padding=1))
    assert out.shape == (N, Cout, H, W), out.shape
    # Tolerance accounts for bf16 matmul operands (f32 accumulation / BN math).
    assert jnp.allclose(out, ref, rtol=2e-2, atol=2e-2), \
        float(jnp.max(jnp.abs(out - ref)))

    print("KERNEL_OK")
</pallas_src>

<mosaic_0001>
module attributes {stable_mosaic.version = 11 : i64} {
  func.func @conv_stats_kernel(%arg0: i32, %arg1: memref<8x36xbf16, #tpu.memory_space<vmem>>, %arg2: memref<36x128xbf16, #tpu.memory_space<vmem>>, %arg3: memref<1x8x1xf32, #tpu.memory_space<vmem>>, %arg4: memref<1x8x1xf32, #tpu.memory_space<vmem>>) attributes {dimension_semantics = [#tpu.dimension_semantics<parallel>], iteration_bounds = array<i64: 4>, scalar_prefetch = 0 : i64, scratch_operands = 0 : i64, tpu.core_type = #tpu.core_type<tc>, window_params = [{pipeline_mode = #tpu.pipeline_mode<synchronous>, transform_indices = @transform_0, window_bounds = array<i64: 8, 36>}, {transform_indices = @transform_1, window_bounds = array<i64: 36, 128>}, {transform_indices = @transform_2, window_bounds = array<i64: 1, 8, 1>}, {transform_indices = @transform_3, window_bounds = array<i64: 1, 8, 1>}]} {
    %c0 = arith.constant 0 : index
    %c0_0 = arith.constant 0 : index
    %0 = vector.load %arg1[%c0, %c0_0] : memref<8x36xbf16, #tpu.memory_space<vmem>>, vector<8x36xbf16>
    %c0_1 = arith.constant 0 : index
    %c0_2 = arith.constant 0 : index
    %1 = vector.load %arg2[%c0_1, %c0_2] : memref<36x128xbf16, #tpu.memory_space<vmem>>, vector<36x128xbf16>
    %cst = arith.constant dense<0.000000e+00> : vector<8x128xf32>
    %2 = tpu.matmul %0, %1, %cst {dimension_numbers = #tpu.dot_dimension_numbers<[1], [0], [0], [1], [0, 0, 1, 1], [], []>} : vector<8x36xbf16>, vector<36x128xbf16>, vector<8x128xf32> -> vector<8x128xf32>
    %cst_3 = arith.constant dense<0.000000e+00> : vector<8xf32>
    %3 = vector.multi_reduction <add>, %2, %cst_3 [1] : vector<8x128xf32> to vector<8xf32>
    %4 = vector.shape_cast %3 : vector<8xf32> to vector<8x1xf32>
    %5 = vector.shape_cast %4 : vector<8x1xf32> to vector<1x8x1xf32>
    %c0_4 = arith.constant 0 : index
    %c0_5 = arith.constant 0 : index
    %c0_6 = arith.constant 0 : index
    %6 = vector.load %arg3[%c0_4, %c0_5, %c0_6] : memref<1x8x1xf32, #tpu.memory_space<vmem>>, vector<1x8x1xf32>
    tpu.vector_store %arg3[%c0_4, %c0_5, %c0_6], %5 {strides = array<i32>} : memref<1x8x1xf32, #tpu.memory_space<vmem>>, vector<1x8x1xf32>,
    %7 = arith.mulf %2, %2 : vector<8x128xf32>
    %cst_7 = arith.constant dense<0.000000e+00> : vector<8xf32>
    %8 = vector.multi_reduction <add>, %7, %cst_7 [1] : vector<8x128xf32> to vector<8xf32>
    %9 = vector.shape_cast %8 : vector<8xf32> to vector<8x1xf32>
    %10 = vector.shape_cast %9 : vector<8x1xf32> to vector<1x8x1xf32>
    %c0_8 = arith.constant 0 : index
    %c0_9 = arith.constant 0 : index
    %c0_10 = arith.constant 0 : index
    %11 = vector.load %arg4[%c0_8, %c0_9, %c0_10] : memref<1x8x1xf32, #tpu.memory_space<vmem>>, vector<1x8x1xf32>
    tpu.vector_store %arg4[%c0_8, %c0_9, %c0_10], %10 {strides = array<i32>} : memref<1x8x1xf32, #tpu.memory_space<vmem>>, vector<1x8x1xf32>,
    return
  }
  func.func @transform_0(%arg0: i32) -> (i32, i32) {
    %c0_i32 = arith.constant 0 : i32
    %c0_i32_0 = arith.constant 0 : i32
    %c0_i32_1 = arith.constant 0 : i32
    return %c0_i32, %c0_i32_0 : i32, i32
  }
  func.func @transform_1(%arg0: i32) -> (i32, i32) {
    %c0_i32 = arith.constant 0 : i32
    %c0_i32_0 = arith.constant 0 : i32
    return %c0_i32, %arg0 : i32, i32
  }
  func.func @transform_2(%arg0: i32) -> (i32, i32, i32) {
    %c0_i32 = arith.constant 0 : i32
    %c0_i32_0 = arith.constant 0 : i32
    %c0_i32_1 = arith.constant 0 : i32
    return %arg0, %c0_i32, %c0_i32_0 : i32, i32, i32
  }
  func.func @transform_3(%arg0: i32) -> (i32, i32, i32) {
    %c0_i32 = arith.constant 0 : i32
    %c0_i32_0 = arith.constant 0 : i32
    %c0_i32_1 = arith.constant 0 : i32
    return %arg0, %c0_i32, %c0_i32_0 : i32, i32, i32
  }
}

</mosaic_0001>

<llo_original>
// kernel: tpu_custom_call.1
$region0: #{tpu_custom_call.1}
  #allocation0 [shape = 'u32[]', space=smem, size = 0x4, offset = 0x4, fixed_abs, tag = 'smem constant byte address 0x4 - core index']
  #allocation1 [shape = 'u32[144,128]{1,0:T(1,128)}', space=vmem, size = 0x12000, scoped, tag = 'internal scratch']
  %s0 = inlined_call_operand.hbm [shape: bf16[8,36], index: 0, kind: input, shape index: {}]
  %s1 = inlined_call_operand.hbm [shape: bf16[36,512], index: 1, kind: input, shape index: {}]
  %s2 = inlined_call_operand.vmem [shape: f32[4,8,1], index: 2, kind: output, shape index: {0}]
  %s3 = inlined_call_operand.vmem [shape: f32[4,8,1], index: 3, kind: output, shape index: {1}]
  %4 = xla_tuple %s2, %s3
  %s5 = sld [smem:[#allocation0]]
  $region57: #{tpu_custom_call.1} parent=0
    _
  %s7 = ssub.s32 1, %s5
  %s8 = scalar_select 0, %s7, %s5
  $region1: #{tpu_custom_call.1} parent=0
    #allocation2 [shape = 'u8[2048]{0}', space=vmem, size = 0x800, scoped, tag = 'input window, operand 0, single buffered']
    #allocation3 [shape = 's32[2]{0}', space=sflag, size = 0x8, scoped, tag = 'scoped memory for tpu_custom_call.1']
    #allocation4 [shape = 'u8[20480]{0}', space=vmem, size = 0x5000, scoped, tag = 'input window, operand 1']
    #allocation5 [shape = 's32[2]{0}', space=sflag, size = 0x8, scoped, tag = 'scoped memory for tpu_custom_call.1']
    %9 = vsyncpa [#allocation3], 0
    %10 = vsyncpa [#allocation5], 0
    %s11 = scalar_lea.sflag [#allocation5], 1
    %12 = vsyncpa %s11, 0
    loop: start=0, step=1, limit=6
    $region2: #{tpu_custom_call.1} parent=1 // loop_pre_header
      _
    $region3: #{tpu_custom_call.1} parent=1 // loop_header
      %s14 = sphi 0, %s18
      %p15 = scmp.ge.s32.totalorder %s14, 6
      %s22 = sphi 0, %s22
      %s24 = sphi 0, %s22
      %s25 = sphi 0, %s24
      %s39 = sphi 0, %s25
      %s45 = sphi 0, %s47
      %s48 = sphi 0, %s45
      %s49 = sphi 0, %s48
      %s65 = sphi 0, %s49
      %s71 = sphi 0, %s73
      %s74 = sphi 0, %s71
      %s75 = sphi 0, %s74
      %s91 = sphi 0, %s75
      %s97 = sphi 0, %s99
      %s100 = sphi 0, %s97
      %s101 = sphi 0, %s100
      %s117 = sphi 0, %s101
    $region4: #{tpu_custom_call.1} parent=1 // loop_header_branch
      %17 = sbr.rel (%p15) target = $region8
    $region5: #{tpu_custom_call.1} parent=1 // loop_body
      %s19 = ssub.s32 %s14, 1
      %s20 = ssub.s32 %s14, 2
      %s21 = sadd.s32 %s14, 1
      %s23 = sadd.s32 %s22, 1
      %p26 = scmp.eq.s32.totalorder %s14, 3
      %p27 = scmp.ne.s32.totalorder %s22, %s24
      %p28 = scmp.eq.s32.totalorder %s14, 0
      %p29 = por %p27, %p28
      %p30 = scmp.ne.s32.totalorder %s22, %s24
      %p31 = scmp.eq.s32.totalorder %s19, 3
      %p32 = por %p30, %p31
      %p33 = scmp.ne.s32.totalorder %s24, %s25
      %p34 = scmp.eq.s32.totalorder %s19, 0
      %p35 = por %p33, %p34
      %p36 = scmp.ne.s32.totalorder %s24, %s25
      %p37 = scmp.eq.s32.totalorder %s20, 3
      %p38 = por %p36, %p37
      %p40 = scmp.ne.s32.totalorder %s25, %s39
      %p41 = scmp.eq.s32.totalorder %s20, 0
      %p42 = por %p40, %p41
      %s43 = ssub.s32 %s14, %s21
      %p44 = scmp.eq.s32.totalorder %s43, 0
      %s46 = sadd.s32 %s45, 1
      %s47 = scalar_select %p44, %s45, %s46
      %p50 = pneg %p44
      %p51 = scmp.eq.s32.totalorder %s14, 3
      %p52 = por %p50, %p51
      %p53 = scmp.ne.s32.totalorder %s45, %s48
      %p54 = scmp.eq.s32.totalorder %s14, 0
      %p55 = por %p53, %p54
      %p56 = scmp.ne.s32.totalorder %s45, %s48
      %p57 = scmp.eq.s32.totalorder %s19, 3
      %p58 = por %p56, %p57
      %p59 = scmp.ne.s32.totalorder %s48, %s49
      %p60 = scmp.eq.s32.totalorder %s19, 0
      %p61 = por %p59, %p60
      %p62 = scmp.ne.s32.totalorder %s48, %s49
      %p63 = scmp.eq.s32.totalorder %s20, 3
      %p64 = por %p62, %p63
      %p66 = scmp.ne.s32.totalorder %s49, %s65
      %p67 = scmp.eq.s32.totalorder %s20, 0
      %p68 = por %p66, %p67
      %s69 = ssub.s32 %s14, %s21
      %p70 = scmp.eq.s32.totalorder %s69, 0
      %s72 = sadd.s32 %s71, 1
      %s73 = scalar_select %p70, %s71, %s72
      %p76 = pneg %p70
      %p77 = scmp.eq.s32.totalorder %s14, 3
      %p78 = por %p76, %p77
      %p79 = scmp.ne.s32.totalorder %s71, %s74
      %p80 = scmp.eq.s32.totalorder %s14, 0
      %p81 = por %p79, %p80
      %p82 = scmp.ne.s32.totalorder %s71, %s74
      %p83 = scmp.eq.s32.totalorder %s19, 3
      %p84 = por %p82, %p83
      %p85 = scmp.ne.s32.totalorder %s74, %s75
      %p86 = scmp.eq.s32.totalorder %s19, 0
      %p87 = por %p85, %p86
      %p88 = scmp.ne.s32.totalorder %s74, %s75
      %p89 = scmp.eq.s32.totalorder %s20, 3
      %p90 = por %p88, %p89
      %p92 = scmp.ne.s32.totalorder %s75, %s91
      %p93 = scmp.eq.s32.totalorder %s20, 0
      %p94 = por %p92, %p93
      %s95 = ssub.s32 %s14, %s21
      %p96 = scmp.eq.s32.totalorder %s95, 0
      %s98 = sadd.s32 %s97, 1
      %s99 = scalar_select %p96, %s97, %s98
      %p102 = pneg %p96
      %p103 = scmp.eq.s32.totalorder %s14, 3
      %p104 = por %p102, %p103
      %p105 = scmp.ne.s32.totalorder %s97, %s100
      %p106 = scmp.eq.s32.totalorder %s14, 0
      %p107 = por %p105, %p106
      %p108 = scmp.ne.s32.totalorder %s97, %s100
      %p109 = scmp.eq.s32.totalorder %s19, 3
      %p110 = por %p108, %p109
      %p111 = scmp.ne.s32.totalorder %s100, %s101
      %p112 = scmp.eq.s32.totalorder %s19, 0
      %p113 = por %p111, %p112
      %p114 = scmp.ne.s32.totalorder %s100, %s101
      %p115 = scmp.eq.s32.totalorder %s20, 3
      %p116 = por %p114, %p115
      %p118 = scmp.ne.s32.totalorder %s101, %s117
      %p119 = scmp.eq.s32.totalorder %s20, 0
      %p120 = por %p118, %p119
      %p121 = scmp.le.s32.totalorder 1, %s14
      %p122 = scmp.lt.s32.totalorder %s14, 5
      %p123 = pnand %p121, %p122
      %p124 = pneg %p123
      // Predicated region
      $region9: #{tpu_custom_call.1} parent=5 // pred_check
        _
      $region10: #{tpu_custom_call.1} parent=5 // pred_check_branch
        %126 = sbr.rel (%p123) target = $region12
      $region11: #{tpu_custom_call.1} parent=5 // pred_region
        %s127 = ssub.s32 %s14, 1
        // Predicated region
        $region13: #{tpu_custom_call.1} parent=11 // pred_check
          %p128 = pneg %p35
        $region14: #{tpu_custom_call.1} parent=11 // pred_check_branch
          %130 = sbr.rel (%p128) target = $region16
        $region15: #{tpu_custom_call.1} parent=11 // pred_region
          %s132 = ssub.s32 64, 64
          %133 = vsyncadd [#allocation3], %s132
          %s135 = sshll.u32 [#allocation2], 4
          %s136 = int_to_ptr.vmem [resolvable:$true] %s135
          %138 = dma.hbm_to_vmem [thread:$0]  %s0, 64, %s136, [#allocation3]
        $region16: #{tpu_custom_call.1} parent=11 // pred_fallthru
          _
      $region12: #{tpu_custom_call.1} parent=5 // pred_fallthru
        _
      %p139 = scmp.lt.s32.totalorder %s14, 4
      // Predicated region
      $region17: #{tpu_custom_call.1} parent=5 // pred_check
        %p140 = pneg %p139
      $region18: #{tpu_custom_call.1} parent=5 // pred_check_branch
        %142 = sbr.rel (%p140) target = $region20
      $region19: #{tpu_custom_call.1} parent=5 // pred_region
        // Predicated region
        $region21: #{tpu_custom_call.1} parent=19 // pred_check
          %p143 = pneg %p55
        $region22: #{tpu_custom_call.1} parent=19 // pred_check_branch
          %145 = sbr.rel (%p143) target = $region24
        $region23: #{tpu_custom_call.1} parent=19 // pred_region
          %s146 = sand.u32 %s45, 1
          %s147 = scalar_lea.sflag [#allocation5], %s146
          %s148 = sand.u32 %s45, 1
          %s149 = smul.addr %s148, 20
          %s150 = scalar_lea.vmem [#allocation4], %s149
          %s152 = ssub.s32 320, 320
          %153 = vsyncadd %s147, %s152
          %s154 = smul.addr %s14, 64
          %s155 = scalar_lea.hbm %s1, %s154
          %s156 = sshll.u32 %s150, 4
          %s157 = int_to_ptr.vmem [resolvable:$true] %s156
          %162 = dma.hbm_to_vmem [thread:$0]  %s155, 320, %s157, %s147, 256, 64, 4
        $region24: #{tpu_custom_call.1} parent=19 // pred_fallthru
          _
      $region20: #{tpu_custom_call.1} parent=5 // pred_fallthru
        _
      %p163 = scmp.le.s32.totalorder 1, %s14
      %p164 = scmp.lt.s32.totalorder %s14, 5
      %p165 = pnand %p163, %p164
      %p166 = pneg %p165
      // Predicated region
      $region25: #{tpu_custom_call.1} parent=5 // pred_check
        _
      $region26: #{tpu_custom_call.1} parent=5 // pred_check_branch
        %168 = sbr.rel (%p165) target = $region28
      $region27: #{tpu_custom_call.1} parent=5 // pred_region
        %s169 = ssub.s32 %s14, 1
        // Predicated region
        $region29: #{tpu_custom_call.1} parent=27 // pred_check
          %p170 = pneg %p35
        $region30: #{tpu_custom_call.1} parent=27 // pred_check_branch
          %172 = sbr.rel (%p170) target = $region32
        $region31: #{tpu_custom_call.1} parent=27 // pred_region
          %173 = dma.done [#allocation3], 64
        $region32: #{tpu_custom_call.1} parent=27 // pred_fallthru
          _
        %s174 = sand.u32 %s48, 1
        %s175 = scalar_lea.sflag [#allocation5], %s174
        %s176 = sand.u32 %s48, 1
        %s177 = smul.addr %s176, 20
        %s178 = scalar_lea.vmem [#allocation4], %s177
        // Predicated region
        $region33: #{tpu_custom_call.1} parent=27 // pred_check
          %p179 = pneg %p61
        $region34: #{tpu_custom_call.1} parent=27 // pred_check_branch
          %181 = sbr.rel (%p179) target = $region36
        $region35: #{tpu_custom_call.1} parent=27 // pred_region
          %182 = dma.done %s175, 320
        $region36: #{tpu_custom_call.1} parent=27 // pred_fallthru
          _
        %p183 = pneg %p35
        %p184 = pneg %p32
        %s185 = sand.u32 %s48, 1
        %s186 = scalar_lea.sflag [#allocation5], %s185
        %s187 = sand.u32 %s48, 1
        %s188 = smul.addr %s187, 20
        %s189 = scalar_lea.vmem [#allocation4], %s188
        %p190 = pneg %p61
        %p191 = pneg %p58
        %p192 = pneg %p87
        %p193 = pneg %p84
        %p194 = scmp.lt.s32.totalorder %s19, 3
        %s195 = scalar_select %p194, %s19, 3
        %s196 = smul.addr %s195, 8
        %s197 = scalar_lea.vmem %s2, %s196
        %p198 = pneg %p113
        %p199 = pneg %p110
        %p200 = scmp.lt.s32.totalorder %s19, 3
        %s201 = scalar_select %p200, %s19, 3
        %s202 = smul.addr %s201, 8
        %s203 = scalar_lea.vmem %s3, %s202
        %p204 = scmp.lt.s32.totalorder %s19, 3
        %s205 = scalar_select %p204, %s19, 3
        %s206 = smul.addr %s205, 8
        %s207 = scalar_lea.vmem %s2, %s206
        %p208 = scmp.lt.s32.totalorder %s19, 3
        %s209 = scalar_select %p208, %s19, 3
        %s210 = smul.addr %s209, 8
        %s211 = scalar_lea.vmem %s3, %s210
        %v213 = vld [vmem:[#allocation2] sm:$0xf]
        %v214 = vld [vmem:[%s178] sm:$0xf]
        %v215 = vld [vmem:[%s178 + $0x4] sm:$0xf]
        %v216 = vld [vmem:[%s178 + $0x8] sm:$0xf]
        %v217 = vld [vmem:[%s178 + $0xc] sm:$0xf]
        %v218 = vld [vmem:[%s178 + $0x10] sm:$0x3]
        %v224 = vunpack.c.l.b16 %v214
        %v225 = vunpack.c.l.b16 %v215
        %v226 = vunpack.c.l.b16 %v216
        %v227 = vunpack.c.l.b16 %v217
        %v228 = vunpack.c.l.b16 %v218
        %v229 = vpack.c.b16 %v225, %v224
        %v230 = vpack.c.b16 %v227, %v226
        %v231 = vpack.c.b16 %v228, %v228
        %vm234 = vcmask 293888
        %v236 = vsel %vm234, %v213, 0
        %vm238 = vcmask 1041408
        %v240 = vsel %vm238, %v231, 0
        %242 = vmatprep.subr.bf16.mxu0 0
        %243 = vmatpush1.bf16.msra.mxu0 %v229
        %244 = vmatprep.subr.bf16.mxu0 0
        %245 = vmatpush1.bf16.msra.mxu0 %v230
        %246 = vmatprep.subr.bf16.mxu0 0
        %247 = vmatpush1.bf16.msra.mxu0 %v240
        %248 = vmatprep.subr.bf16.mxu0 0
        %249 = vmatpush1.bf16.msra.mxu0 0
        %250 = vmatprep.subr.bf16.mxu0 0
        %251 = vmatpush1.bf16.msra.mxu0 0
        %252 = vmatprep.subr.bf16.mxu0 0
        %253 = vmatpush1.bf16.msra.mxu0 0
        %254 = vmatprep.subr.bf16.mxu0 0
        %255 = vmatpush1.bf16.msra.mxu0 0
        %256 = vmatprep.subr.bf16.mxu0 0
        %257 = vmatpush1.bf16.msra.mxu0 0
        %258 = vmatprep.subr.bf16.mxu0 0
        %259 = vmatpush1.bf16.msra.mxu0 0
        %260 = vmatprep.subr.bf16.mxu0 0
        %261 = vmatpush1.bf16.msra.mxu0 0
        %262 = vmatprep.subr.bf16.mxu0 0
        %263 = vmatpush1.bf16.msra.mxu0 0
        %264 = vmatprep.subr.bf16.mxu0 0
        %265 = vmatpush1.bf16.msra.mxu0 0
        %266 = vmatprep.subr.bf16.mxu0 0
        %267 = vmatpush1.bf16.msra.mxu0 0
        %268 = vmatprep.subr.bf16.mxu0 0
        %269 = vmatpush1.bf16.msra.mxu0 0
        %270 = vmatprep.subr.bf16.mxu0 0
        %271 = vmatpush1.bf16.msra.mxu0 0
        %272 = vmatprep.subr.bf16.mxu0 0
        %273 = vmatpush1.bf16.msra.mxu0 0
        %274 = vmatprep.mubr.bf16.mxu0 0
        %275 = vmatmul.mubr.bf16.gmra.mrb[0].mxu0 %v236
        %v276 = vpop.f32.mrb[0].mxu0
        %v277 = vadd.f32 0.0, %v276
        %v278 = vpop.f32.mrb[0].mxu0
        %v279 = vpop.f32.mrb[0].mxu0
        %v280 = vpop.f32.mrb[0].mxu0
        %281 = vdwg.mxu0
        %282 = vadd.xlane.f32.xlu0 %v277
        %v283 = vpop.xlane.xlu0 %282
        %vm284 = vcmask 7168
        %285 = vst.msk [vmem:[%s207] sm:$0xff] %vm284, %v283
        %v286 = vmul.f32 %v277, %v277
        %287 = vadd.xlane.f32.xlu0 %v286
        %v288 = vpop.xlane.xlu0 %287
        %289 = vst.msk [vmem:[%s211] sm:$0xff] %vm284, %v288
        %p290 = scmp.lt.s32.totalorder %s19, 3
        %s291 = scalar_select %p290, %s19, 3
        %s292 = smul.addr %s291, 8
        %s293 = scalar_lea.vmem %s2, %s292
        %p294 = scmp.lt.s32.totalorder %s19, 3
        %s295 = scalar_select %p294, %s19, 3
        %s296 = smul.addr %s295, 8
        %s297 = scalar_lea.vmem %s3, %s296
        // Predicated region
        $region37: #{tpu_custom_call.1} parent=27 // pred_check
          %p298 = pneg %p84
        $region38: #{tpu_custom_call.1} parent=27 // pred_check_branch
          %300 = sbr.rel (%p298) target = $region40
        $region39: #{tpu_custom_call.1} parent=27 // pred_region
          _
        $region40: #{tpu_custom_call.1} parent=27 // pred_fallthru
          _
        // Predicated region
        $region41: #{tpu_custom_call.1} parent=27 // pred_check
          %p301 = pneg %p110
        $region42: #{tpu_custom_call.1} parent=27 // pred_check_branch
          %303 = sbr.rel (%p301) target = $region44
        $region43: #{tpu_custom_call.1} parent=27 // pred_region
          _
        $region44: #{tpu_custom_call.1} parent=27 // pred_fallthru
          _
      $region28: #{tpu_custom_call.1} parent=5 // pred_fallthru
        _
      %p304 = scmp.le.s32.totalorder 2, %s14
      // Predicated region
      $region45: #{tpu_custom_call.1} parent=5 // pred_check
        %p305 = pneg %p304
      $region46: #{tpu_custom_call.1} parent=5 // pred_check_branch
        %307 = sbr.rel (%p305) target = $region48
      $region47: #{tpu_custom_call.1} parent=5 // pred_region
        %s308 = ssub.s32 %s14, 2
        // Predicated region
        $region49: #{tpu_custom_call.1} parent=47 // pred_check
          %p309 = pneg %p90
        $region50: #{tpu_custom_call.1} parent=47 // pred_check_branch
          %311 = sbr.rel (%p309) target = $region52
        $region51: #{tpu_custom_call.1} parent=47 // pred_region
          %p312 = scmp.lt.s32.totalorder %s20, 3
          %s313 = scalar_select %p312, %s20, 3
          %s314 = smul.addr %s313, 8
          %s315 = scalar_lea.vmem %s2, %s314
        $region52: #{tpu_custom_call.1} parent=47 // pred_fallthru
          _
        // Predicated region
        $region53: #{tpu_custom_call.1} parent=47 // pred_check
          %p316 = pneg %p116
        $region54: #{tpu_custom_call.1} parent=47 // pred_check_branch
          %318 = sbr.rel (%p316) target = $region56
        $region55: #{tpu_custom_call.1} parent=47 // pred_region
          %p319 = scmp.lt.s32.totalorder %s20, 3
          %s320 = scalar_select %p319, %s20, 3
          %s321 = smul.addr %s320, 8
          %s322 = scalar_lea.vmem %s3, %s321
        $region56: #{tpu_custom_call.1} parent=47 // pred_fallthru
          _
      $region48: #{tpu_custom_call.1} parent=5 // pred_fallthru
        _
    $region6: #{tpu_custom_call.1} parent=1 // loop_footer
      %s18 = sadd.s32 1, %s14
    $region7: #{tpu_custom_call.1} parent=1 // loop_footer_branch
      %13 = sbr.rel target = $region3
    $region8: #{tpu_custom_call.1} parent=1 // loop_exit
      _
    %323 = vsyncpa [#allocation3], 1
    %s324 = scalar_lea.sflag [#allocation3], 1
    %325 = vsyncpa %s324, 1
    %326 = vsyncpa [#allocation5], 1
    %s327 = scalar_lea.sflag [#allocation5], 1
    %328 = vsyncpa %s327, 1

</llo_original>
